<compile_context>
chip_gen: v6e
topology: v6e:2x2x1
jax: 0.10.0
libtpu: 0.0.40
codegen_flags: <defaults>
</compile_context>

<pallas_src>
import jax
import jax.numpy as jnp
from jax.experimental import pallas as pl
from jax.experimental.pallas import tpu as pltpu


def fm_kernel(b_ref, x_ref, v_ref, w_ref, ns_ref, o_ref):
    """One batch tile of the FM forward pass.

    b_ref : SMEM (1, 1)   linear bias
    x_ref : VMEM (TB, F)  input tile (streamed / double-buffered)
    v_ref : VMEM (F, H)   factor matrix (resident)
    w_ref : VMEM (1, F)   linear weight as a row, f32 (resident)
    ns_ref: VMEM (1, F)   -0.5 * sum_h v[f, h]^2, f32 (resident)
    o_ref : VMEM (TB, 1)  sigmoid(first_order + second_order)
    """
    x = x_ref[...]

    # MXU: x @ v, f32 accumulation.
    xv = jnp.dot(x, v_ref[...], preferred_element_type=jnp.float32)     # (TB, H)
    # 0.5 * sum_h (x @ v)_h^2
    half_sq_of_sum = 0.5 * jnp.sum(xv * xv, axis=1, keepdims=True)      # (TB, 1)

    # VPU: linear term and -0.5 * sum_of_square fused into one lane reduce:
    #   sum_f x_f * (w_f - 0.5 * s_f * x_f)
    xf = x.astype(jnp.float32)
    lin_minus_half_sos = jnp.sum(
        xf * (w_ref[...] + ns_ref[...] * xf), axis=1, keepdims=True)    # (TB, 1)

    out = jax.nn.sigmoid(b_ref[0, 0] + half_sq_of_sum + lin_minus_half_sos)
    o_ref[...] = out.astype(o_ref.dtype)


def fm_forward(x, w, b, v, *, tb=4096, stream_dtype=None):
    """FM forward.

    x: (B, F); w: (F, 1) (transposed nn.Linear weight); b: scalar; v: (F, H).
    Returns sigmoid(x @ w + b + 0.5 * sum_h[(x@v)_h^2 - (x^2@v^2)_h]), shape (B, 1).
    """
    B, F = x.shape
    H = v.shape[1]

    if stream_dtype is not None:
        # Optional: halve the dominant HBM read stream (accumulation stays f32).
        x = x.astype(stream_dtype)

    # Tiny parameter prep (runs once per call, fused by XLA).
    v_c = v.astype(x.dtype)                                              # (F, H)
    w_row = jnp.reshape(w, (1, F)).astype(jnp.float32)                   # (1, F)
    neg_half_s = (-0.5 * jnp.sum(v.astype(jnp.float32) ** 2,
                                 axis=1)).reshape(1, F)                  # (1, F)
    b_arr = jnp.reshape(b, (1, 1)).astype(jnp.float32)                   # (1, 1)

    # --- Batch tile selection -------------------------------------------------
    itemsize = jnp.dtype(x.dtype).itemsize
    # Keep the double-buffered x stream comfortably inside VMEM (~24 MiB budget:
    # v7x has 64 MiB physical / 32 MiB scoped default).
    max_rows = max((24 << 20) // (2 * F * itemsize), 8)
    TB = min(int(tb), int(max_rows))
    if TB >= 512:
        TB -= TB % 512          # large, sublane-aligned tiles (review: >=2048)
    else:
        TB -= TB % 8
    TB = max(TB, 8)
    if B <= TB:
        TB = B                  # one tile covering the whole (small) batch
    grid = (pl.cdiv(B, TB),)

    # Raise the scoped-VMEM limit (v5e default is 16 MiB) with headroom; cap at
    # v7x's 64 MiB physical VMEM.
    vmem_bytes = (2 * TB * F * itemsize            # double-buffered x tiles
                  + 2 * TB * 4                     # double-buffered output tiles
                  + F * 128 * itemsize             # resident v (lane-padded)
                  + 2 * 8 * max(F, 128) * 4)       # resident w_row / -0.5*s rows
    vmem_limit = int(min(max(vmem_bytes + (8 << 20), 32 << 20), 64 << 20))

    return pl.pallas_call(
        fm_kernel,
        out_shape=jax.ShapeDtypeStruct((B, 1), jnp.float32),
        grid=grid,
        in_specs=[
            pl.BlockSpec(memory_space=pltpu.SMEM),       # bias scalar (whole array)
            pl.BlockSpec((TB, F), lambda i: (i, 0)),     # x: streamed per batch tile
            pl.BlockSpec((F, H), lambda i: (0, 0)),      # v: resident
            pl.BlockSpec((1, F), lambda i: (0, 0)),      # w row: resident
            pl.BlockSpec((1, F), lambda i: (0, 0)),      # -0.5*sum(v^2): resident
        ],
        out_specs=pl.BlockSpec((TB, 1), lambda i: (i, 0)),
        compiler_params=pltpu.CompilerParams(
            dimension_semantics=("parallel",),
            vmem_limit_bytes=vmem_limit),
    )(b_arr, x, v_c, w_row, neg_half_s)


def fm_reference(x, w, b, v):
    first = x @ w + b
    square_of_sum = (x @ v) ** 2
    sum_of_square = (x ** 2) @ (v ** 2)
    second = 0.5 * jnp.sum(square_of_sum - sum_of_square, axis=1, keepdims=True)
    return jax.nn.sigmoid(first + second)


def _make_params(key, B, F, H):
    kx, kw, kb, kv = jax.random.split(key, 4)
    x = jax.random.normal(kx, (B, F), dtype=jnp.float32)
    # nn.Linear(F, 1): weight uniform(-1/sqrt(F), 1/sqrt(F)); stored transposed (F, 1).
    bound = 1.0 / jnp.sqrt(jnp.float32(F))
    w = jax.random.uniform(kw, (F, 1), minval=-bound, maxval=bound, dtype=jnp.float32)
    b = jax.random.uniform(kb, (), minval=-bound, maxval=bound, dtype=jnp.float32)
    # v: xavier_uniform over (F, H) -> bound = sqrt(6 / (F + H))
    xav = jnp.sqrt(6.0 / (F + H))
    v = jax.random.uniform(kv, (F, H), minval=-xav, maxval=xav, dtype=jnp.float32)
    return x, w, b, v


if __name__ == "__main__":
    # Small shapes consistent with the module: batch=8, feats_num=16, hidden_dim=32.
    x, w, b, v = _make_params(jax.random.PRNGKey(0), 8, 16, 32)
    out = fm_forward(x, w, b, v)
    jax.block_until_ready(out)
    ref = fm_reference(x, w, b, v)
    assert out.shape == (8, 1)
    assert jnp.allclose(out, ref, atol=2e-5, rtol=1e-4), (out, ref)

    # Larger case exercising the multi-tile batch grid (2 tiles at TB=4096,
    # resident v / w / s blocks, both TensorCores engaged on v7x).
    x, w, b, v = _make_params(jax.random.PRNGKey(1), 8192, 256, 32)
    out = fm_forward(x, w, b, v)
    jax.block_until_ready(out)
    ref = fm_reference(x, w, b, v)
    assert out.shape == (8192, 1)
    assert jnp.allclose(out, ref, atol=2e-5, rtol=1e-4), float(
        jnp.max(jnp.abs(out - ref)))

    print("KERNEL_OK")
</pallas_src>

<mosaic_0001>
module attributes {stable_mosaic.version = 11 : i64} {
  func.func @fm_kernel(%arg0: i32, %arg1: memref<1x1xf32, #tpu.memory_space<smem>>, %arg2: memref<8x16xf32, #tpu.memory_space<vmem>>, %arg3: memref<16x32xf32, #tpu.memory_space<vmem>>, %arg4: memref<1x16xf32, #tpu.memory_space<vmem>>, %arg5: memref<1x16xf32, #tpu.memory_space<vmem>>, %arg6: memref<8x1xf32, #tpu.memory_space<vmem>>) attributes {dimension_semantics = [#tpu.dimension_semantics<parallel>], iteration_bounds = array<i64: 1>, scalar_prefetch = 0 : i64, scratch_operands = 0 : i64, tpu.core_type = #tpu.core_type<tc>, window_params = [{transform_indices = @transform_0, window_bounds = array<i64: 1, 1>}, {transform_indices = @transform_1, window_bounds = array<i64: 8, 16>}, {pipeline_mode = #tpu.pipeline_mode<synchronous>, transform_indices = @transform_2, window_bounds = array<i64: 16, 32>}, {pipeline_mode = #tpu.pipeline_mode<synchronous>, transform_indices = @transform_3, window_bounds = array<i64: 1, 16>}, {pipeline_mode = #tpu.pipeline_mode<synchronous>, transform_indices = @transform_4, window_bounds = array<i64: 1, 16>}, {transform_indices = @transform_5, window_bounds = array<i64: 8, 1>}]} {
    %c0 = arith.constant 0 : index
    %c0_0 = arith.constant 0 : index
    %0 = vector.load %arg2[%c0, %c0_0] : memref<8x16xf32, #tpu.memory_space<vmem>>, vector<8x16xf32>
    %c0_1 = arith.constant 0 : index
    %c0_2 = arith.constant 0 : index
    %1 = vector.load %arg3[%c0_1, %c0_2] : memref<16x32xf32, #tpu.memory_space<vmem>>, vector<16x32xf32>
    %cst = arith.constant dense<0.000000e+00> : vector<8x32xf32>
    %2 = tpu.matmul %0, %1, %cst {dimension_numbers = #tpu.dot_dimension_numbers<[1], [0], [0], [1], [0, 0, 1, 1], [], []>} : vector<8x16xf32>, vector<16x32xf32>, vector<8x32xf32> -> vector<8x32xf32>
    %3 = arith.mulf %2, %2 : vector<8x32xf32>
    %cst_3 = arith.constant dense<0.000000e+00> : vector<8xf32>
    %4 = vector.multi_reduction <add>, %3, %cst_3 [1] : vector<8x32xf32> to vector<8xf32>
    %5 = vector.shape_cast %4 : vector<8xf32> to vector<8x1xf32>
    %cst_4 = arith.constant 5.000000e-01 : f32
    %6 = vector.broadcast %cst_4 : f32 to vector<8x1xf32>
    %7 = arith.mulf %6, %5 : vector<8x1xf32>
    %c0_5 = arith.constant 0 : index
    %c0_6 = arith.constant 0 : index
    %8 = vector.load %arg4[%c0_5, %c0_6] : memref<1x16xf32, #tpu.memory_space<vmem>>, vector<1x16xf32>
    %c0_7 = arith.constant 0 : index
    %c0_8 = arith.constant 0 : index
    %9 = vector.load %arg5[%c0_7, %c0_8] : memref<1x16xf32, #tpu.memory_space<vmem>>, vector<1x16xf32>
    %10 = vector.broadcast %9 : vector<1x16xf32> to vector<8x16xf32>
    %11 = arith.mulf %10, %0 : vector<8x16xf32>
    %12 = vector.broadcast %8 : vector<1x16xf32> to vector<8x16xf32>
    %13 = arith.addf %12, %11 : vector<8x16xf32>
    %14 = arith.mulf %0, %13 : vector<8x16xf32>
    %cst_9 = arith.constant dense<0.000000e+00> : vector<8xf32>
    %15 = vector.multi_reduction <add>, %14, %cst_9 [1] : vector<8x16xf32> to vector<8xf32>
    %16 = vector.shape_cast %15 : vector<8xf32> to vector<8x1xf32>
    %c0_10 = arith.constant 0 : index
    %c0_11 = arith.constant 0 : index
    %17 = memref.load %arg1[%c0_10, %c0_11] : memref<1x1xf32, #tpu.memory_space<smem>>
    %18 = vector.broadcast %17 : f32 to vector<8x1xf32>
    %19 = arith.addf %18, %7 : vector<8x1xf32>
    %20 = arith.addf %19, %16 : vector<8x1xf32>
    %21 = arith.negf %20 : vector<8x1xf32>
    %22 = math.exp %21 : vector<8x1xf32>
    %cst_12 = arith.constant 1.000000e+00 : f32
    %23 = vector.broadcast %cst_12 : f32 to vector<8x1xf32>
    %24 = arith.addf %23, %22 : vector<8x1xf32>
    %25 = arith.divf %23, %24 : vector<8x1xf32>
    %c0_13 = arith.constant 0 : index
    %c0_14 = arith.constant 0 : index
    %26 = vector.load %arg6[%c0_13, %c0_14] : memref<8x1xf32, #tpu.memory_space<vmem>>, vector<8x1xf32>
    tpu.vector_store %arg6[%c0_13, %c0_14], %25 {strides = array<i32>} : memref<8x1xf32, #tpu.memory_space<vmem>>, vector<8x1xf32>,
    return
  }
  func.func @transform_0(%arg0: i32) -> (i32, i32) {
    %c0_i32 = arith.constant 0 : i32
    %c0_i32_0 = arith.constant 0 : i32
    %c0_i32_1 = arith.constant 0 : i32
    return %c0_i32, %c0_i32_0 : i32, i32
  }
  func.func @transform_1(%arg0: i32) -> (i32, i32) {
    %c0_i32 = arith.constant 0 : i32
    %c0_i32_0 = arith.constant 0 : i32
    return %arg0, %c0_i32 : i32, i32
  }
  func.func @transform_2(%arg0: i32) -> (i32, i32) {
    %c0_i32 = arith.constant 0 : i32
    %c0_i32_0 = arith.constant 0 : i32
    %c0_i32_1 = arith.constant 0 : i32
    return %c0_i32, %c0_i32_0 : i32, i32
  }
  func.func @transform_3(%arg0: i32) -> (i32, i32) {
    %c0_i32 = arith.constant 0 : i32
    %c0_i32_0 = arith.constant 0 : i32
    %c0_i32_1 = arith.constant 0 : i32
    return %c0_i32, %c0_i32_0 : i32, i32
  }
  func.func @transform_4(%arg0: i32) -> (i32, i32) {
    %c0_i32 = arith.constant 0 : i32
    %c0_i32_0 = arith.constant 0 : i32
    %c0_i32_1 = arith.constant 0 : i32
    return %c0_i32, %c0_i32_0 : i32, i32
  }
  func.func @transform_5(%arg0: i32) -> (i32, i32) {
    %c0_i32 = arith.constant 0 : i32
    %c0_i32_0 = arith.constant 0 : i32
    return %arg0, %c0_i32 : i32, i32
  }
}

</mosaic_0001>

<llo_original>
// kernel: tpu_custom_call.1
$region0: #{tpu_custom_call.1}
  #allocation0 [shape = 'u32[]', space=smem, size = 0x4, offset = 0x4, fixed_abs, tag = 'smem constant byte address 0x4 - core index']
  #allocation1 [shape = 'u32[144,128]{1,0:T(1,128)}', space=vmem, size = 0x12000, scoped, tag = 'internal scratch']
  #allocation2 [shape = 'f32[1,1]{1,0:T(1,128)S(6)}', space=smem, size = 0x200, scoped, tag = 'scoped memory for tpu_custom_call.1']
  %s0 = inlined_call_operand.<no memory space> [shape: f32[1,1], index: 0, kind: input, shape index: {}]
  %s1 = inlined_call_operand.hbm [shape: f32[8,16], index: 1, kind: input, shape index: {}]
  %s2 = inlined_call_operand.hbm [shape: f32[16,32], index: 2, kind: input, shape index: {}]
  %s3 = inlined_call_operand.vmem [shape: f32[1,16], index: 3, kind: input, shape index: {}]
  %s4 = inlined_call_operand.vmem [shape: f32[1,16], index: 4, kind: input, shape index: {}]
  %s5 = inlined_call_operand.vmem [shape: f32[8,1], index: 5, kind: output, shape index: {}]
  %s6 = sld [smem:[#allocation0]]
  $region38: #{tpu_custom_call.1} parent=0
    _
  %s8 = ssub.s32 1, %s6
  %s9 = scalar_select 0, %s8, %s6
  %10 = sst [smem:[#allocation2]] %s0
  $region1: #{tpu_custom_call.1} parent=0
    #allocation3 [shape = 'u8[4096]{0}', space=vmem, size = 0x1000, scoped, tag = 'input window, operand 1, single buffered']
    #allocation4 [shape = 's32[1]{0}', space=sflag, size = 0x4, scoped, tag = 'scoped memory for tpu_custom_call.1']
    #allocation5 [shape = 'u8[8192]{0}', space=vmem, size = 0x2000, scoped, tag = 'input window, operand 2, single buffered']
    #allocation6 [shape = 's32[1]{0}', space=sflag, size = 0x4, scoped, tag = 'scoped memory for tpu_custom_call.1']
    %11 = vsyncpa [#allocation4], 0
    %12 = vsyncpa [#allocation6], 0
    // Predicated region
    $region2: #{tpu_custom_call.1} parent=1 // pred_check
      _
    $region3: #{tpu_custom_call.1} parent=1 // pred_check_branch
      %14 = sbr.rel (0) target = $region5
    $region4: #{tpu_custom_call.1} parent=1 // pred_region
      _
    $region5: #{tpu_custom_call.1} parent=1 // pred_fallthru
      _
    // Predicated region
    $region6: #{tpu_custom_call.1} parent=1 // pred_check
      _
    $region7: #{tpu_custom_call.1} parent=1 // pred_check_branch
      %16 = sbr.rel (0) target = $region9
    $region8: #{tpu_custom_call.1} parent=1 // pred_region
      %s18 = ssub.s32 128, 128
      %19 = vsyncadd [#allocation4], %s18
      %s21 = sshll.u32 [#allocation3], 4
      %s22 = int_to_ptr.vmem [resolvable:$true] %s21
      %24 = dma.hbm_to_vmem [thread:$0]  %s1, 128, %s22, [#allocation4]
    $region9: #{tpu_custom_call.1} parent=1 // pred_fallthru
      _
    // Predicated region
    $region10: #{tpu_custom_call.1} parent=1 // pred_check
      _
    $region11: #{tpu_custom_call.1} parent=1 // pred_check_branch
      %26 = sbr.rel (0) target = $region13
    $region12: #{tpu_custom_call.1} parent=1 // pred_region
      %s28 = ssub.s32 256, 256
      %29 = vsyncadd [#allocation6], %s28
      %s30 = sshll.u32 [#allocation5], 4
      %s31 = int_to_ptr.vmem [resolvable:$true] %s30
      %36 = dma.hbm_to_vmem [thread:$0]  %s2, 256, %s31, [#allocation6], 128, 128, 8
    $region13: #{tpu_custom_call.1} parent=1 // pred_fallthru
      _
    // Predicated region
    $region14: #{tpu_custom_call.1} parent=1 // pred_check
      _
    $region15: #{tpu_custom_call.1} parent=1 // pred_check_branch
      %38 = sbr.rel (0) target = $region17
    $region16: #{tpu_custom_call.1} parent=1 // pred_region
      _
    $region17: #{tpu_custom_call.1} parent=1 // pred_fallthru
      _
    // Predicated region
    $region18: #{tpu_custom_call.1} parent=1 // pred_check
      _
    $region19: #{tpu_custom_call.1} parent=1 // pred_check_branch
      %40 = sbr.rel (0) target = $region21
    $region20: #{tpu_custom_call.1} parent=1 // pred_region
      _
    $region21: #{tpu_custom_call.1} parent=1 // pred_fallthru
      _
    // Predicated region
    $region22: #{tpu_custom_call.1} parent=1 // pred_check
      _
    $region23: #{tpu_custom_call.1} parent=1 // pred_check_branch
      %42 = sbr.rel (0) target = $region25
    $region24: #{tpu_custom_call.1} parent=1 // pred_region
      %43 = dma.done [#allocation4], 128
    $region25: #{tpu_custom_call.1} parent=1 // pred_fallthru
      _
    // Predicated region
    $region26: #{tpu_custom_call.1} parent=1 // pred_check
      _
    $region27: #{tpu_custom_call.1} parent=1 // pred_check_branch
      %45 = sbr.rel (0) target = $region29
    $region28: #{tpu_custom_call.1} parent=1 // pred_region
      %46 = dma.done [#allocation6], 256
    $region29: #{tpu_custom_call.1} parent=1 // pred_fallthru
      _
    %v47 = vld [vmem:[#allocation3] sm:$0xff]
    %v48 = vld [vmem:[#allocation5] sm:$0xff]
    %v49 = vld [vmem:[#allocation5 + $0x8] sm:$0xff]
    %vm50 = vcmask 130048
    %v52 = vsel %vm50, %v47, 0
    %54 = vmatprep.subr.mxu0 0.0
    %55 = vmatpush1.msra.mxu0 0.0
    %56 = vmatprep.subr.mxu0 0.0
    %57 = vmatpush1.msra.mxu0 0.0
    %58 = vmatprep.subr.mxu0 0.0
    %59 = vmatpush1.msra.mxu0 0.0
    %60 = vmatprep.subr.mxu0 0.0
    %61 = vmatpush1.msra.mxu0 0.0
    %62 = vmatprep.subr.mxu0 0.0
    %63 = vmatpush1.msra.mxu0 0.0
    %64 = vmatprep.subr.mxu0 0.0
    %65 = vmatpush1.msra.mxu0 0.0
    %66 = vmatprep.subr.mxu0 0.0
    %67 = vmatpush1.msra.mxu0 0.0
    %68 = vmatprep.subr.mxu0 0.0
    %69 = vmatpush1.msra.mxu0 0.0
    %70 = vmatprep.subr.mxu0 0.0
    %71 = vmatpush1.msra.mxu0 0.0
    %72 = vmatprep.subr.mxu0 0.0
    %73 = vmatpush1.msra.mxu0 0.0
    %74 = vmatprep.subr.mxu0 0.0
    %75 = vmatpush1.msra.mxu0 0.0
    %76 = vmatprep.subr.mxu0 0.0
    %77 = vmatpush1.msra.mxu0 0.0
    %78 = vmatprep.subr.mxu0 0.0
    %79 = vmatpush1.msra.mxu0 0.0
    %80 = vmatprep.subr.mxu0 0.0
    %81 = vmatpush1.msra.mxu0 0.0
    %82 = vmatprep.subr.mxu0 0.0
    %83 = vmatpush1.msra.mxu0 %v49
    %84 = vmatprep.subr.mxu0 0.0
    %85 = vmatpush1.msra.mxu0 %v48
    %86 = vmatprep.subr.mxu0 0.0
    %87 = vmatpush2.msra.mxu0 0.0
    %88 = vmatprep.subr.mxu0 0.0
    %89 = vmatpush2.msra.mxu0 0.0
    %90 = vmatprep.subr.mxu0 0.0
    %91 = vmatpush2.msra.mxu0 0.0
    %92 = vmatprep.subr.mxu0 0.0
    %93 = vmatpush2.msra.mxu0 0.0
    %94 = vmatprep.subr.mxu0 0.0
    %95 = vmatpush2.msra.mxu0 0.0
    %96 = vmatprep.subr.mxu0 0.0
    %97 = vmatpush2.msra.mxu0 0.0
    %98 = vmatprep.subr.mxu0 0.0
    %99 = vmatpush2.msra.mxu0 0.0
    %100 = vmatprep.subr.mxu0 0.0
    %101 = vmatpush2.msra.mxu0 0.0
    %102 = vmatprep.subr.mxu0 0.0
    %103 = vmatpush2.msra.mxu0 0.0
    %104 = vmatprep.subr.mxu0 0.0
    %105 = vmatpush2.msra.mxu0 0.0
    %106 = vmatprep.subr.mxu0 0.0
    %107 = vmatpush2.msra.mxu0 0.0
    %108 = vmatprep.subr.mxu0 0.0
    %109 = vmatpush2.msra.mxu0 0.0
    %110 = vmatprep.subr.mxu0 0.0
    %111 = vmatpush2.msra.mxu0 0.0
    %112 = vmatprep.subr.mxu0 0.0
    %113 = vmatpush2.msra.mxu0 0.0
    %114 = vmatprep.subr.mxu0 0.0
    %115 = vmatpush2.msra.mxu0 0.0
    %116 = vmatprep.subr.mxu0 0.0
    %117 = vmatpush2.msra.mxu0 0.0
    %118 = vmatprep.mubr.f32.mxu0 0.0
    %119 = vmatmul.mubr.f32.gmra.mxu0 %v52
    %v120 = vpop.f32.mrf.mxu0
    %v121 = vadd.f32 0.0, %v120
    %v122 = vpop.f32.mrf.mxu0
    %123 = vdwg.mxu0
    %v124 = vmul.f32 %v121, %v121
    %vm125 = vcmask 261120
    %v126 = vsel %vm125, %v124, 0.0
    %127 = vadd.xlane.f32.xlu0 %v126
    %v128 = vpop.xlane.xlu0 %127
    %v129 = vmul.f32 %v128, 0.5
    %v130 = vld [vmem:[%s3] sm:$0x1]
    %v131 = vld [vmem:[%s4] sm:$0x1]
    %v133 = vlaneseq
    %v134 = vshrl.u32 %v133, 7
    %v135 = vsub.s32 0, %v134
    %v136 = vrot.slane %v131, %v135
    %v138 = vmul.f32 %v136, %v47
    %v140 = vlaneseq
    %v141 = vshrl.u32 %v140, 7
    %v142 = vsub.s32 0, %v141
    %v143 = vrot.slane %v130, %v142
    %v145 = vadd.f32 %v143, %v138
    %v146 = vmul.f32 %v47, %v145
    %v147 = vsel %vm50, %v146, 0.0
    %148 = vadd.xlane.f32.xlu0 %v147
    %v149 = vpop.xlane.xlu0 %148
    %s150 = sld [smem:[#allocation2]]
    %v151 = vstv %s150
    %v152 = vadd.f32 %v151, %v129
    %v153 = vadd.f32 %v152, %v149
    %v154 = vxor.u32 %v153, 2147483648
    %v155 = vmul.f32 %v154, 1.442695
    %v156 = vpow.pop %v155
    %v157 = vadd.f32 %v156, 1.0
    %v158 = vrcp.pop %v157
    %v159 = vmul.f32 1.0, %v158
    %vm160 = vcmask 7168
    %161 = vst.msk [vmem:[%s5] sm:$0xff] %vm160, %v159
    // Predicated region
    $region30: #{tpu_custom_call.1} parent=1 // pred_check
      _
    $region31: #{tpu_custom_call.1} parent=1 // pred_check_branch
      %163 = sbr.rel (0) target = $region33
    $region32: #{tpu_custom_call.1} parent=1 // pred_region
      _
    $region33: #{tpu_custom_call.1} parent=1 // pred_fallthru
      _
    // Predicated region
    $region34: #{tpu_custom_call.1} parent=1 // pred_check
      _
    $region35: #{tpu_custom_call.1} parent=1 // pred_check_branch
      %165 = sbr.rel (0) target = $region37
    $region36: #{tpu_custom_call.1} parent=1 // pred_region
      _
    $region37: #{tpu_custom_call.1} parent=1 // pred_fallthru
      _
    %166 = vsyncpa [#allocation4], 1
    %167 = vsyncpa [#allocation6], 1

</llo_original>
